<compile_context>
chip_gen: v6e
topology: v6e:2x2x1
jax: 0.10.0
libtpu: 0.0.40
codegen_flags: <defaults>
</compile_context>

<pallas_src>
import jax
import jax.numpy as jnp
from jax.experimental import pallas as pl
from jax.experimental.pallas import tpu as pltpu


# ----------------------------------------------------------------------------
# Fused single-pass kernel: pool + FC + scale on a (bB, C, S) slab.
# ----------------------------------------------------------------------------
def _ca_fused_kernel(x_ref, w1t_ref, w2t_ref, o_ref):
    # x_ref : (bB, C, S)   several batch elements, spatial flattened (lanes)
    # w1t_ref: (C, Cr)     first 1x1x1 conv weight, pre-transposed
    # w2t_ref: (Cr, C)     second 1x1x1 conv weight, pre-transposed
    x = x_ref[...]                                            # native dtype
    inv_s = jnp.float32(1.0 / x.shape[-1])

    # Global average pool over spatial lanes; accumulate in f32.
    pooled = jnp.sum(x.astype(jnp.float32), axis=-1) * inv_s  # (bB, C)

    # Tiny FC in lane-dense row-vector form (no lane-width-1 mat-vecs).
    w1t = w1t_ref[...].astype(jnp.float32)                    # (C, Cr)
    w2t = w2t_ref[...].astype(jnp.float32)                    # (Cr, C)
    h = jnp.maximum(
        jnp.dot(pooled, w1t, preferred_element_type=jnp.float32), 0.0)  # (bB, Cr)
    y = jax.nn.sigmoid(
        jnp.dot(h, w2t, preferred_element_type=jnp.float32))            # (bB, C)

    # Per-channel scale in the input's native dtype (bf16 VALU on v6e/v7x).
    o_ref[...] = x * y.astype(x.dtype)[:, :, None]


def _fused_channel_attention(x_flat, w1t, w2t, bB, vmem_limit, donate_input):
    B, C, S = x_flat.shape
    Cr = w1t.shape[1]
    extra = {"input_output_aliases": {0: 0}} if donate_input else {}
    return pl.pallas_call(
        _ca_fused_kernel,
        out_shape=jax.ShapeDtypeStruct((B, C, S), x_flat.dtype),
        grid_spec=pltpu.PrefetchScalarGridSpec(
            num_scalar_prefetch=0,
            grid=(B // bB,),
            in_specs=[
                pl.BlockSpec((bB, C, S), lambda i: (i, 0, 0)),
                pl.BlockSpec((C, Cr), lambda i: (0, 0)),
                pl.BlockSpec((Cr, C), lambda i: (0, 0)),
            ],
            out_specs=pl.BlockSpec((bB, C, S), lambda i: (i, 0, 0)),
        ),
        compiler_params=pltpu.CompilerParams(
            dimension_semantics=("parallel",),
            vmem_limit_bytes=vmem_limit,
        ),
        **extra,
    )(x_flat, w1t, w2t)


# ----------------------------------------------------------------------------
# Two-pass fallback for (C, S) slabs that do not fit the VMEM budget.
# ----------------------------------------------------------------------------
def _make_pool_kernel(s_total, t_s):
    needs_mask = (s_total % t_s) != 0

    def kernel(x_ref, sum_ref):
        # x_ref: (1, C, tS); sum_ref: (1, C, 1) resident accumulator per b
        s = pl.program_id(1)

        @pl.when(s == 0)
        def _():
            sum_ref[...] = jnp.zeros_like(sum_ref)

        xf = x_ref[...].astype(jnp.float32)
        if needs_mask:  # trace-time constant; only emitted when S % tS != 0
            lane = jax.lax.broadcasted_iota(jnp.int32, xf.shape, 2) + s * t_s
            xf = jnp.where(lane < s_total, xf, 0.0)
        sum_ref[...] += jnp.sum(xf, axis=-1, keepdims=True)

    return kernel


def _scale_kernel(x_ref, y_ref, o_ref):
    # x_ref/o_ref: (1, C, tS); y_ref: (1, C, 1)
    o_ref[...] = x_ref[...] * y_ref[...].astype(x_ref.dtype)


def _two_pass_channel_attention(x_flat, w1, w2, t_s, vmem_limit):
    B, C, S = x_flat.shape
    n_s = pl.cdiv(S, t_s)

    # Pass 1: pooled sums, tiled over spatial.
    sums = pl.pallas_call(
        _make_pool_kernel(S, t_s),
        out_shape=jax.ShapeDtypeStruct((B, C, 1), jnp.float32),
        grid_spec=pltpu.PrefetchScalarGridSpec(
            num_scalar_prefetch=0,
            grid=(B, n_s),
            in_specs=[pl.BlockSpec((1, C, t_s), lambda b, s: (b, 0, s))],
            out_specs=pl.BlockSpec((1, C, 1), lambda b, s: (b, 0, 0)),
        ),
        compiler_params=pltpu.CompilerParams(
            dimension_semantics=("parallel", "arbitrary"),
            vmem_limit_bytes=vmem_limit,
        ),
    )(x_flat)

    # Tiny FC in plain JAX (negligible vs. the HBM-bound streams).
    pooled = sums[:, :, 0] * jnp.float32(1.0 / S)                     # (B, C)
    h = jnp.maximum(pooled @ w1.T.astype(jnp.float32), 0.0)          # (B, Cr)
    y = jax.nn.sigmoid(h @ w2.T.astype(jnp.float32)).reshape(B, C, 1)

    # Pass 2: per-channel rescale, tiled over spatial.
    return pl.pallas_call(
        _scale_kernel,
        out_shape=jax.ShapeDtypeStruct((B, C, S), x_flat.dtype),
        grid_spec=pltpu.PrefetchScalarGridSpec(
            num_scalar_prefetch=0,
            grid=(B, n_s),
            in_specs=[
                pl.BlockSpec((1, C, t_s), lambda b, s: (b, 0, s)),
                pl.BlockSpec((1, C, 1), lambda b, s: (b, 0, 0)),
            ],
            out_specs=pl.BlockSpec((1, C, t_s), lambda b, s: (b, 0, s)),
        ),
        compiler_params=pltpu.CompilerParams(
            dimension_semantics=("parallel", "parallel"),
            vmem_limit_bytes=vmem_limit,
        ),
    )(x_flat, y)


# ----------------------------------------------------------------------------
# Public wrapper.
# ----------------------------------------------------------------------------
def channel_attention(x, w1, w2, *,
                      vmem_block_budget_bytes=32 * 1024 * 1024,
                      donate_input=False):
    """x: (B, C, D, H, W); w1: (C//r, C); w2: (C, C//r).

    Returns x * sigmoid(W2 @ relu(W1 @ global_avg_pool(x))).
    """
    B, C, D, H, W = x.shape
    S = D * H * W
    x_flat = x.reshape(B, C, S)
    itemsize = jnp.dtype(x.dtype).itemsize
    per_batch_bytes = C * S * itemsize
    # Double-buffered input + output block ≈ 4x block bytes resident;
    # 48 MiB scoped limit is safe on v5e/v6e (128 MiB) and v7x (64 MiB).
    vmem_limit = 48 * 1024 * 1024

    if 4 * per_batch_bytes <= vmem_block_budget_bytes:
        # Fused single-pass path; fold batch elements so blocks are multi-MiB.
        bB = min(B, vmem_block_budget_bytes // (4 * per_batch_bytes))
        while B % bB:
            bB -= 1
        out_flat = _fused_channel_attention(
            x_flat, w1.T, w2.T, bB, vmem_limit, donate_input)
    else:
        # Two-pass fallback: pool then scale, with a 128-multiple spatial tile.
        max_ts = (vmem_block_budget_bytes // (4 * C * itemsize)) // 128 * 128
        t_s = min(max(128, max_ts), S)
        out_flat = _two_pass_channel_attention(x_flat, w1, w2, t_s, vmem_limit)

    return out_flat.reshape(B, C, D, H, W)


def channel_attention_ref(x, w1, w2):
    """Pure-JAX reference of the intended PyTorch forward."""
    pooled = jnp.mean(x, axis=(2, 3, 4))                  # (B, C)
    h = jnp.maximum(pooled @ w1.T, 0.0)                   # (B, Cr)
    y = jax.nn.sigmoid(h @ w2.T)                          # (B, C)
    return x * y[:, :, None, None, None]


if __name__ == "__main__":
    # Small, layout-friendly shapes: C=32 (reduction_ratio=16 -> Cr=2),
    # spatial 8x8x8 -> S=512 (multiple of 128 lanes).
    B, C, D, H, W = 2, 32, 8, 8, 8
    reduction_ratio = 16
    Cr = C // reduction_ratio

    key = jax.random.PRNGKey(0)
    kx, k1, k2 = jax.random.split(key, 3)
    x = jax.random.normal(kx, (B, C, D, H, W), dtype=jnp.float32)
    w1 = jax.random.normal(k1, (Cr, C), dtype=jnp.float32) * (1.0 / jnp.sqrt(C))
    w2 = jax.random.normal(k2, (C, Cr), dtype=jnp.float32) * (1.0 / jnp.sqrt(Cr))

    ref = channel_attention_ref(x, w1, w2)

    # Fused single-pass path (default VMEM budget).
    out = jax.block_until_ready(channel_attention(x, w1, w2))
    assert out.shape == (B, C, D, H, W)
    assert jnp.allclose(out, ref, atol=1e-5, rtol=1e-5), "fused path mismatch"

    # Force and verify the two-pass (spatially tiled) fallback path.
    out2 = jax.block_until_ready(
        channel_attention(x, w1, w2, vmem_block_budget_bytes=64 * 1024))
    assert jnp.allclose(out2, ref, atol=1e-5, rtol=1e-5), "two-pass path mismatch"

    print("KERNEL_OK")
</pallas_src>

<mosaic_0001>
module attributes {stable_mosaic.version = 11 : i64} {
  func.func @_ca_fused_kernel(%arg0: i32, %arg1: memref<2x32x512xf32, #tpu.memory_space<vmem>>, %arg2: memref<32x2xf32, #tpu.memory_space<vmem>>, %arg3: memref<2x32xf32, #tpu.memory_space<vmem>>, %arg4: memref<2x32x512xf32, #tpu.memory_space<vmem>>) attributes {dimension_semantics = [#tpu.dimension_semantics<parallel>], iteration_bounds = array<i64: 1>, scalar_prefetch = 0 : i64, scratch_operands = 0 : i64, tpu.core_type = #tpu.core_type<tc>, window_params = [{transform_indices = @transform_0, window_bounds = array<i64: 2, 32, 512>}, {pipeline_mode = #tpu.pipeline_mode<synchronous>, transform_indices = @transform_1, window_bounds = array<i64: 32, 2>}, {pipeline_mode = #tpu.pipeline_mode<synchronous>, transform_indices = @transform_2, window_bounds = array<i64: 2, 32>}, {transform_indices = @transform_3, window_bounds = array<i64: 2, 32, 512>}]} {
    %c0 = arith.constant 0 : index
    %c0_0 = arith.constant 0 : index
    %c0_1 = arith.constant 0 : index
    %0 = vector.load %arg1[%c0, %c0_0, %c0_1] : memref<2x32x512xf32, #tpu.memory_space<vmem>>, vector<2x32x512xf32>
    %cst = arith.constant dense<0.000000e+00> : vector<2x32xf32>
    %1 = vector.multi_reduction <add>, %0, %cst [2] : vector<2x32x512xf32> to vector<2x32xf32>
    %cst_2 = arith.constant 0.001953125 : f32
    %2 = vector.broadcast %cst_2 : f32 to vector<2x32xf32>
    %3 = arith.mulf %1, %2 : vector<2x32xf32>
    %c0_3 = arith.constant 0 : index
    %c0_4 = arith.constant 0 : index
    %4 = vector.load %arg2[%c0_3, %c0_4] : memref<32x2xf32, #tpu.memory_space<vmem>>, vector<32x2xf32>
    %c0_5 = arith.constant 0 : index
    %c0_6 = arith.constant 0 : index
    %5 = vector.load %arg3[%c0_5, %c0_6] : memref<2x32xf32, #tpu.memory_space<vmem>>, vector<2x32xf32>
    %cst_7 = arith.constant dense<0.000000e+00> : vector<2x2xf32>
    %6 = tpu.matmul %3, %4, %cst_7 {dimension_numbers = #tpu.dot_dimension_numbers<[1], [0], [0], [1], [0, 0, 1, 1], [], []>} : vector<2x32xf32>, vector<32x2xf32>, vector<2x2xf32> -> vector<2x2xf32>
    %cst_8 = arith.constant 0.000000e+00 : f32
    %7 = vector.broadcast %cst_8 : f32 to vector<2x2xf32>
    %8 = arith.maximumf %6, %7 : vector<2x2xf32>
    %cst_9 = arith.constant dense<0.000000e+00> : vector<2x32xf32>
    %9 = tpu.matmul %8, %5, %cst_9 {dimension_numbers = #tpu.dot_dimension_numbers<[1], [0], [0], [1], [0, 0, 1, 1], [], []>} : vector<2x2xf32>, vector<2x32xf32>, vector<2x32xf32> -> vector<2x32xf32>
    %10 = arith.negf %9 : vector<2x32xf32>
    %11 = math.exp %10 : vector<2x32xf32>
    %cst_10 = arith.constant 1.000000e+00 : f32
    %12 = vector.broadcast %cst_10 : f32 to vector<2x32xf32>
    %13 = arith.addf %12, %11 : vector<2x32xf32>
    %14 = arith.divf %12, %13 : vector<2x32xf32>
    %15 = vector.shape_cast %14 : vector<2x32xf32> to vector<2x32x1xf32>
    %16 = vector.broadcast %15 : vector<2x32x1xf32> to vector<2x32x512xf32>
    %17 = arith.mulf %0, %16 : vector<2x32x512xf32>
    %c0_11 = arith.constant 0 : index
    %c0_12 = arith.constant 0 : index
    %c0_13 = arith.constant 0 : index
    %18 = vector.load %arg4[%c0_11, %c0_12, %c0_13] : memref<2x32x512xf32, #tpu.memory_space<vmem>>, vector<2x32x512xf32>
    tpu.vector_store %arg4[%c0_11, %c0_12, %c0_13], %17 {strides = array<i32>} : memref<2x32x512xf32, #tpu.memory_space<vmem>>, vector<2x32x512xf32>,
    return
  }
  func.func @transform_0(%arg0: i32) -> (i32, i32, i32) {
    %c0_i32 = arith.constant 0 : i32
    %c0_i32_0 = arith.constant 0 : i32
    %c0_i32_1 = arith.constant 0 : i32
    return %arg0, %c0_i32, %c0_i32_0 : i32, i32, i32
  }
  func.func @transform_1(%arg0: i32) -> (i32, i32) {
    %c0_i32 = arith.constant 0 : i32
    %c0_i32_0 = arith.constant 0 : i32
    %c0_i32_1 = arith.constant 0 : i32
    return %c0_i32, %c0_i32_0 : i32, i32
  }
  func.func @transform_2(%arg0: i32) -> (i32, i32) {
    %c0_i32 = arith.constant 0 : i32
    %c0_i32_0 = arith.constant 0 : i32
    %c0_i32_1 = arith.constant 0 : i32
    return %c0_i32, %c0_i32_0 : i32, i32
  }
  func.func @transform_3(%arg0: i32) -> (i32, i32, i32) {
    %c0_i32 = arith.constant 0 : i32
    %c0_i32_0 = arith.constant 0 : i32
    %c0_i32_1 = arith.constant 0 : i32
    return %arg0, %c0_i32, %c0_i32_0 : i32, i32, i32
  }
}

</mosaic_0001>

<llo_original>
// kernel: tpu_custom_call.1
$region0: #{tpu_custom_call.1}
  #allocation0 [shape = 'u32[]', space=smem, size = 0x4, offset = 0x4, fixed_abs, tag = 'smem constant byte address 0x4 - core index']
  #allocation1 [shape = 'u32[144,128]{1,0:T(1,128)}', space=vmem, size = 0x12000, scoped, tag = 'internal scratch']
  %s0 = inlined_call_operand.hbm [shape: f32[2,32,512], index: 0, kind: input, shape index: {}]
  %s1 = inlined_call_operand.vmem [shape: f32[32,2], index: 1, kind: input, shape index: {}]
  %s2 = inlined_call_operand.vmem [shape: f32[2,32], index: 2, kind: input, shape index: {}]
  %s3 = inlined_call_operand.hbm [shape: f32[2,32,512], index: 3, kind: output, shape index: {}]
  %s4 = sld [smem:[#allocation0]]
  $region26: #{tpu_custom_call.1} parent=0
    _
  %s6 = ssub.s32 1, %s4
  %s7 = scalar_select 0, %s6, %s4
  $region1: #{tpu_custom_call.1} parent=0
    #allocation2 [shape = 'u8[131072]{0}', space=vmem, size = 0x20000, scoped, tag = 'input window, operand 0, single buffered']
    #allocation3 [shape = 's32[1]{0}', space=sflag, size = 0x4, scoped, tag = 'scoped memory for tpu_custom_call.1']
    #allocation4 [shape = 's32[1]{0}', space=sflag, size = 0x4, scoped, tag = 'scoped memory for tpu_custom_call.1']
    #allocation5 [shape = 'u8[131072]{0}', space=vmem, size = 0x20000, scoped, tag = 'output window, operand 0, single buffered']
    %8 = vsyncpa [#allocation3], 0
    %9 = vsyncpa [#allocation4], 0
    // Predicated region
    $region2: #{tpu_custom_call.1} parent=1 // pred_check
      _
    $region3: #{tpu_custom_call.1} parent=1 // pred_check_branch
      %11 = sbr.rel (0) target = $region5
    $region4: #{tpu_custom_call.1} parent=1 // pred_region
      %s13 = ssub.s32 4096, 4096
      %14 = vsyncadd [#allocation3], %s13
      %s15 = sshll.u32 [#allocation2], 4
      %s16 = int_to_ptr.vmem [resolvable:$true] %s15
      %21 = dma.hbm_to_vmem [thread:$0]  %s0, 4096, %s16, [#allocation3], 512, 512, 32
    $region5: #{tpu_custom_call.1} parent=1 // pred_fallthru
      _
    // Predicated region
    $region6: #{tpu_custom_call.1} parent=1 // pred_check
      _
    $region7: #{tpu_custom_call.1} parent=1 // pred_check_branch
      %23 = sbr.rel (0) target = $region9
    $region8: #{tpu_custom_call.1} parent=1 // pred_region
      _
    $region9: #{tpu_custom_call.1} parent=1 // pred_fallthru
      _
    // Predicated region
    $region10: #{tpu_custom_call.1} parent=1 // pred_check
      _
    $region11: #{tpu_custom_call.1} parent=1 // pred_check_branch
      %25 = sbr.rel (0) target = $region13
    $region12: #{tpu_custom_call.1} parent=1 // pred_region
      _
    $region13: #{tpu_custom_call.1} parent=1 // pred_fallthru
      _
    // Predicated region
    $region14: #{tpu_custom_call.1} parent=1 // pred_check
      _
    $region15: #{tpu_custom_call.1} parent=1 // pred_check_branch
      %27 = sbr.rel (0) target = $region17
    $region16: #{tpu_custom_call.1} parent=1 // pred_region
      %28 = dma.done [#allocation3], 4096
    $region17: #{tpu_custom_call.1} parent=1 // pred_fallthru
      _
    %v29 = vld [vmem:[#allocation2] sm:$0xff]
    %v30 = vld [vmem:[#allocation2 + $0x8] sm:$0xff]
    %v31 = vld [vmem:[#allocation2 + $0x10] sm:$0xff]
    %v32 = vld [vmem:[#allocation2 + $0x18] sm:$0xff]
    %v33 = vld [vmem:[#allocation2 + $0x20] sm:$0xff]
    %v34 = vld [vmem:[#allocation2 + $0x28] sm:$0xff]
    %v35 = vld [vmem:[#allocation2 + $0x30] sm:$0xff]
    %v36 = vld [vmem:[#allocation2 + $0x38] sm:$0xff]
    %v37 = vld [vmem:[#allocation2 + $0x40] sm:$0xff]
    %v38 = vld [vmem:[#allocation2 + $0x48] sm:$0xff]
    %v39 = vld [vmem:[#allocation2 + $0x50] sm:$0xff]
    %v40 = vld [vmem:[#allocation2 + $0x58] sm:$0xff]
    %v41 = vld [vmem:[#allocation2 + $0x60] sm:$0xff]
    %v42 = vld [vmem:[#allocation2 + $0x68] sm:$0xff]
    %v43 = vld [vmem:[#allocation2 + $0x70] sm:$0xff]
    %v44 = vld [vmem:[#allocation2 + $0x78] sm:$0xff]
    %v45 = vld [vmem:[#allocation2 + $0x80] sm:$0xff]
    %v46 = vld [vmem:[#allocation2 + $0x88] sm:$0xff]
    %v47 = vld [vmem:[#allocation2 + $0x90] sm:$0xff]
    %v48 = vld [vmem:[#allocation2 + $0x98] sm:$0xff]
    %v49 = vld [vmem:[#allocation2 + $0xa0] sm:$0xff]
    %v50 = vld [vmem:[#allocation2 + $0xa8] sm:$0xff]
    %v51 = vld [vmem:[#allocation2 + $0xb0] sm:$0xff]
    %v52 = vld [vmem:[#allocation2 + $0xb8] sm:$0xff]
    %v53 = vld [vmem:[#allocation2 + $0xc0] sm:$0xff]
    %v54 = vld [vmem:[#allocation2 + $0xc8] sm:$0xff]
    %v55 = vld [vmem:[#allocation2 + $0xd0] sm:$0xff]
    %v56 = vld [vmem:[#allocation2 + $0xd8] sm:$0xff]
    %v57 = vld [vmem:[#allocation2 + $0xe0] sm:$0xff]
    %v58 = vld [vmem:[#allocation2 + $0xe8] sm:$0xff]
    %v59 = vld [vmem:[#allocation2 + $0xf0] sm:$0xff]
    %v60 = vld [vmem:[#allocation2 + $0xf8] sm:$0xff]
    %v61 = vadd.f32 %v29, %v30
    %v62 = vadd.f32 %v61, %v31
    %v63 = vadd.f32 %v62, %v32
    %64 = vadd.xlane.f32.xlu0 %v63
    %v65 = vpop.xlane.xlu0 %64
    %v66 = vadd.f32 %v33, %v34
    %v67 = vadd.f32 %v66, %v35
    %v68 = vadd.f32 %v67, %v36
    %69 = vadd.xlane.f32.xlu0 %v68
    %v70 = vpop.xlane.xlu0 %69
    %v71 = vadd.f32 %v37, %v38
    %v72 = vadd.f32 %v71, %v39
    %v73 = vadd.f32 %v72, %v40
    %74 = vadd.xlane.f32.xlu0 %v73
    %v75 = vpop.xlane.xlu0 %74
    %v76 = vadd.f32 %v41, %v42
    %v77 = vadd.f32 %v76, %v43
    %v78 = vadd.f32 %v77, %v44
    %79 = vadd.xlane.f32.xlu0 %v78
    %v80 = vpop.xlane.xlu0 %79
    %v81 = vadd.f32 %v45, %v46
    %v82 = vadd.f32 %v81, %v47
    %v83 = vadd.f32 %v82, %v48
    %84 = vadd.xlane.f32.xlu0 %v83
    %v85 = vpop.xlane.xlu0 %84
    %v86 = vadd.f32 %v49, %v50
    %v87 = vadd.f32 %v86, %v51
    %v88 = vadd.f32 %v87, %v52
    %89 = vadd.xlane.f32.xlu0 %v88
    %v90 = vpop.xlane.xlu0 %89
    %v91 = vadd.f32 %v53, %v54
    %v92 = vadd.f32 %v91, %v55
    %v93 = vadd.f32 %v92, %v56
    %94 = vadd.xlane.f32.xlu0 %v93
    %v95 = vpop.xlane.xlu0 %94
    %v96 = vadd.f32 %v57, %v58
    %v97 = vadd.f32 %v96, %v59
    %v98 = vadd.f32 %v97, %v60
    %99 = vadd.xlane.f32.xlu0 %v98
    %v100 = vpop.xlane.xlu0 %99
    %v101 = vmul.f32 %v65, 0.001953125
    %v102 = vmul.f32 %v70, 0.001953125
    %v103 = vmul.f32 %v75, 0.001953125
    %v104 = vmul.f32 %v80, 0.001953125
    %v105 = vmul.f32 %v85, 0.001953125
    %v106 = vmul.f32 %v90, 0.001953125
    %v107 = vmul.f32 %v95, 0.001953125
    %v108 = vmul.f32 %v100, 0.001953125
    %v109 = vld [vmem:[%s1] sm:$0xff]
    %v110 = vld [vmem:[%s1 + $0x8] sm:$0xff]
    %v111 = vld [vmem:[%s1 + $0x10] sm:$0xff]
    %v112 = vld [vmem:[%s1 + $0x18] sm:$0xff]
    %v113 = vld [vmem:[%s2] sm:$0x3]
    %v122 = vlaneseq
    %v123 = vand.u32 %v122, 127
    %v124 = vlaneseq
    %v125 = vshrl.u32 %v124, 7
    %v126 = vsub.s32 %v123, %v125
    %v127 = vrot.slane %v101, %v126
    %v128 = vadd.s32 %v123, 4294967288
    %v129 = vlaneseq
    %v130 = vshrl.u32 %v129, 7
    %v131 = vsub.s32 %v128, %v130
    %v132 = vrot.slane %v102, %v131
    %vm133 = vcmask 130112
    %v134 = vsel %vm133, %v132, %v127
    %v135 = vadd.s32 %v123, 4294967280
    %v136 = vlaneseq
    %v137 = vshrl.u32 %v136, 7
    %v138 = vsub.s32 %v135, %v137
    %v139 = vrot.slane %v103, %v138
    %vm140 = vcmask 195712
    %v141 = vsel %vm140, %v139, %v134
    %v142 = vadd.s32 %v123, 4294967272
    %v143 = vlaneseq
    %v144 = vshrl.u32 %v143, 7
    %v145 = vsub.s32 %v142, %v144
    %v146 = vrot.slane %v104, %v145
    %vm147 = vcmask 261312
    %v148 = vsel %vm147, %v146, %v141
    %v149 = vlaneseq
    %v150 = vshrl.u32 %v149, 7
    %v151 = vsub.s32 %v123, %v150
    %v152 = vrot.slane %v105, %v151
    %v153 = vlaneseq
    %v154 = vshrl.u32 %v153, 7
    %v155 = vsub.s32 %v128, %v154
    %v156 = vrot.slane %v106, %v155
    %v157 = vsel %vm133, %v156, %v152
    %v158 = vlaneseq
    %v159 = vshrl.u32 %v158, 7
    %v160 = vsub.s32 %v135, %v159
    %v161 = vrot.slane %v107, %v160
    %v162 = vsel %vm140, %v161, %v157
    %v163 = vlaneseq
    %v164 = vshrl.u32 %v163, 7
    %v165 = vsub.s32 %v142, %v164
    %v166 = vrot.slane %v108, %v165
    %v167 = vsel %vm147, %v166, %v162
    %vm168 = vcmask 1041409
    %v169 = vsel %vm168, %v167, %v148
    %vm170 = vcmask 261120
    %v171 = vsel %vm170, %v169, 0
    %173 = vmatprep.subr.mxu0 0.0
    %174 = vmatpush1.msra.mxu0 0.0
    %175 = vmatprep.subr.mxu0 0.0
    %176 = vmatpush1.msra.mxu0 0.0
    %177 = vmatprep.subr.mxu0 0.0
    %178 = vmatpush1.msra.mxu0 0.0
    %179 = vmatprep.subr.mxu0 0.0
    %180 = vmatpush1.msra.mxu0 0.0
    %181 = vmatprep.subr.mxu0 0.0
    %182 = vmatpush1.msra.mxu0 0.0
    %183 = vmatprep.subr.mxu0 0.0
    %184 = vmatpush1.msra.mxu0 0.0
    %185 = vmatprep.subr.mxu0 0.0
    %186 = vmatpush1.msra.mxu0 0.0
    %187 = vmatprep.subr.mxu0 0.0
    %188 = vmatpush1.msra.mxu0 0.0
    %189 = vmatprep.subr.mxu0 0.0
    %190 = vmatpush1.msra.mxu0 0.0
    %191 = vmatprep.subr.mxu0 0.0
    %192 = vmatpush1.msra.mxu0 0.0
    %193 = vmatprep.subr.mxu0 0.0
    %194 = vmatpush1.msra.mxu0 0.0
    %195 = vmatprep.subr.mxu0 0.0
    %196 = vmatpush1.msra.mxu0 0.0
    %197 = vmatprep.subr.mxu0 0.0
    %198 = vmatpush1.msra.mxu0 %v112
    %199 = vmatprep.subr.mxu0 0.0
    %200 = vmatpush1.msra.mxu0 %v111
    %201 = vmatprep.subr.mxu0 0.0
    %202 = vmatpush1.msra.mxu0 %v110
    %203 = vmatprep.subr.mxu0 0.0
    %204 = vmatpush1.msra.mxu0 %v109
    %205 = vmatprep.subr.mxu0 0.0
    %206 = vmatpush2.msra.mxu0 0.0
    %207 = vmatprep.subr.mxu0 0.0
    %208 = vmatpush2.msra.mxu0 0.0
    %209 = vmatprep.subr.mxu0 0.0
    %210 = vmatpush2.msra.mxu0 0.0
    %211 = vmatprep.subr.mxu0 0.0
    %212 = vmatpush2.msra.mxu0 0.0
    %213 = vmatprep.subr.mxu0 0.0
    %214 = vmatpush2.msra.mxu0 0.0
    %215 = vmatprep.subr.mxu0 0.0
    %216 = vmatpush2.msra.mxu0 0.0
    %217 = vmatprep.subr.mxu0 0.0
    %218 = vmatpush2.msra.mxu0 0.0
    %219 = vmatprep.subr.mxu0 0.0
    %220 = vmatpush2.msra.mxu0 0.0
    %221 = vmatprep.subr.mxu0 0.0
    %222 = vmatpush2.msra.mxu0 0.0
    %223 = vmatprep.subr.mxu0 0.0
    %224 = vmatpush2.msra.mxu0 0.0
    %225 = vmatprep.subr.mxu0 0.0
    %226 = vmatpush2.msra.mxu0 0.0
    %227 = vmatprep.subr.mxu0 0.0
    %228 = vmatpush2.msra.mxu0 0.0
    %229 = vmatprep.subr.mxu0 0.0
    %230 = vmatpush2.msra.mxu0 0.0
    %231 = vmatprep.subr.mxu0 0.0
    %232 = vmatpush2.msra.mxu0 0.0
    %233 = vmatprep.subr.mxu0 0.0
    %234 = vmatpush2.msra.mxu0 0.0
    %235 = vmatprep.subr.mxu0 0.0
    %236 = vmatpush2.msra.mxu0 0.0
    %237 = vmatprep.mubr.f32.mxu0 0.0
    %238 = vmatmul.mubr.f32.gmra.mxu0 %v171
    %v239 = vpop.f32.mrf.mxu0
    %v240 = vadd.f32 0.0, %v239
    %v241 = vpop.f32.mrf.mxu0
    %242 = vdwg.mxu0
    %v243 = vmax.f32 %v240, 0.0
    %vm244 = vcmask 15360
    %v246 = vsel %vm244, %v243, 0
    %vm248 = vcmask 1041408
    %v250 = vsel %vm248, %v113, 0
    %252 = vmatprep.subr.mxu0 0.0
    %253 = vmatpush1.msra.mxu0 0.0
    %254 = vmatprep.subr.mxu0 0.0
    %255 = vmatpush1.msra.mxu0 0.0
    %256 = vmatprep.subr.mxu0 0.0
    %257 = vmatpush1.msra.mxu0 0.0
    %258 = vmatprep.subr.mxu0 0.0
    %259 = vmatpush1.msra.mxu0 0.0
    %260 = vmatprep.subr.mxu0 0.0
    %261 = vmatpush1.msra.mxu0 0.0
    %262 = vmatprep.subr.mxu0 0.0
    %263 = vmatpush1.msra.mxu0 0.0
    %264 = vmatprep.subr.mxu0 0.0
    %265 = vmatpush1.msra.mxu0 0.0
    %266 = vmatprep.subr.mxu0 0.0
    %267 = vmatpush1.msra.mxu0 0.0
    %268 = vmatprep.subr.mxu0 0.0
    %269 = vmatpush1.msra.mxu0 0.0
    %270 = vmatprep.subr.mxu0 0.0
    %271 = vmatpush1.msra.mxu0 0.0
    %272 = vmatprep.subr.mxu0 0.0
    %273 = vmatpush1.msra.mxu0 0.0
    %274 = vmatprep.subr.mxu0 0.0
    %275 = vmatpush1.msra.mxu0 0.0
    %276 = vmatprep.subr.mxu0 0.0
    %277 = vmatpush1.msra.mxu0 0.0
    %278 = vmatprep.subr.mxu0 0.0
    %279 = vmatpush1.msra.mxu0 0.0
    %280 = vmatprep.subr.mxu0 0.0
    %281 = vmatpush1.msra.mxu0 0.0
    %282 = vmatprep.subr.mxu0 0.0
    %283 = vmatpush1.msra.mxu0 %v250
    %284 = vmatprep.subr.mxu0 0.0
    %285 = vmatpush2.msra.mxu0 0.0
    %286 = vmatprep.subr.mxu0 0.0
    %287 = vmatpush2.msra.mxu0 0.0
    %288 = vmatprep.subr.mxu0 0.0
    %289 = vmatpush2.msra.mxu0 0.0
    %290 = vmatprep.subr.mxu0 0.0
    %291 = vmatpush2.msra.mxu0 0.0
    %292 = vmatprep.subr.mxu0 0.0
    %293 = vmatpush2.msra.mxu0 0.0
    %294 = vmatprep.subr.mxu0 0.0
    %295 = vmatpush2.msra.mxu0 0.0
    %296 = vmatprep.subr.mxu0 0.0
    %297 = vmatpush2.msra.mxu0 0.0
    %298 = vmatprep.subr.mxu0 0.0
    %299 = vmatpush2.msra.mxu0 0.0
    %300 = vmatprep.subr.mxu0 0.0
    %301 = vmatpush2.msra.mxu0 0.0
    %302 = vmatprep.subr.mxu0 0.0
    %303 = vmatpush2.msra.mxu0 0.0
    %304 = vmatprep.subr.mxu0 0.0
    %305 = vmatpush2.msra.mxu0 0.0
    %306 = vmatprep.subr.mxu0 0.0
    %307 = vmatpush2.msra.mxu0 0.0
    %308 = vmatprep.subr.mxu0 0.0
    %309 = vmatpush2.msra.mxu0 0.0
    %310 = vmatprep.subr.mxu0 0.0
    %311 = vmatpush2.msra.mxu0 0.0
    %312 = vmatprep.subr.mxu0 0.0
    %313 = vmatpush2.msra.mxu0 0.0
    %314 = vmatprep.subr.mxu0 0.0
    %315 = vmatpush2.msra.mxu0 0.0
    %316 = vmatprep.mubr.f32.mxu0 0.0
    %317 = vmatmul.mubr.f32.gmra.mxu0 %v246
    %v318 = vpop.f32.mrf.mxu0
    %v319 = vadd.f32 0.0, %v318
    %v320 = vpop.f32.mrf.mxu0
    %321 = vdwg.mxu0
    %v322 = vxor.u32 %v319, 2147483648
    %v323 = vmul.f32 %v322, 1.442695
    %v324 = vpow.pop %v323
    %v325 = vadd.f32 %v324, 1.0
    %v326 = vrcp.pop %v325
    %v327 = vmul.f32 1.0, %v326
    %v328 = vlaneseq
    %v329 = vshrl.u32 %v328, 7
    %v330 = vsub.s32 0, %v329
    %v331 = vrot.slane %v327, %v330
    %333 = vbcast.lane.b32.xlu0 %v331, 256
    %v334 = vpop.permute.xlu0 %333
    %s336 = sor.u32 256, 8
    %337 = vbcast.lane.b32.xlu0 %v331, %s336
    %v338 = vpop.permute.xlu0 %337
    %s340 = sor.u32 256, 16
    %341 = vbcast.lane.b32.xlu0 %v331, %s340
    %v342 = vpop.permute.xlu0 %341
    %s344 = sor.u32 256, 24
    %345 = vbcast.lane.b32.xlu0 %v331, %s344
    %v346 = vpop.permute.xlu0 %345
    %v347 = vlaneseq
    %v348 = vshrl.u32 %v347, 7
    %v349 = vsub.s32 1, %v348
    %v350 = vrot.slane %v327, %v349
    %352 = vbcast.lane.b32.xlu0 %v350, 256
    %v353 = vpop.permute.xlu0 %352
    %s355 = sor.u32 256, 8
    %356 = vbcast.lane.b32.xlu0 %v350, %s355
    %v357 = vpop.permute.xlu0 %356
    %s359 = sor.u32 256, 16
    %360 = vbcast.lane.b32.xlu0 %v350, %s359
    %v361 = vpop.permute.xlu0 %360
    %s363 = sor.u32 256, 24
    %364 = vbcast.lane.b32.xlu0 %v350, %s363
    %v365 = vpop.permute.xlu0 %364
    %v366 = vmul.f32 %v29, %v334
    %v367 = vmul.f32 %v30, %v334
    %v368 = vmul.f32 %v31, %v334
    %v369 = vmul.f32 %v32, %v334
    %v370 = vmul.f32 %v33, %v338
    %v371 = vmul.f32 %v34, %v338
    %v372 = vmul.f32 %v35, %v338
    %v373 = vmul.f32 %v36, %v338
    %v374 = vmul.f32 %v37, %v342
    %v375 = vmul.f32 %v38, %v342
    %v376 = vmul.f32 %v39, %v342
    %v377 = vmul.f32 %v40, %v342
    %v378 = vmul.f32 %v41, %v346
    %v379 = vmul.f32 %v42, %v346
    %v380 = vmul.f32 %v43, %v346
    %v381 = vmul.f32 %v44, %v346
    %v382 = vmul.f32 %v45, %v353
    %v383 = vmul.f32 %v46, %v353
    %v384 = vmul.f32 %v47, %v353
    %v385 = vmul.f32 %v48, %v353
    %v386 = vmul.f32 %v49, %v357
    %v387 = vmul.f32 %v50, %v357
    %v388 = vmul.f32 %v51, %v357
    %v389 = vmul.f32 %v52, %v357
    %v390 = vmul.f32 %v53, %v361
    %v391 = vmul.f32 %v54, %v361
    %v392 = vmul.f32 %v55, %v361
    %v393 = vmul.f32 %v56, %v361
    %v394 = vmul.f32 %v57, %v365
    %v395 = vmul.f32 %v58, %v365
    %v396 = vmul.f32 %v59, %v365
    %v397 = vmul.f32 %v60, %v365
    %398 = vst [vmem:[#allocation5] sm:$0xff] %v366
    %399 = vst [vmem:[#allocation5 + $0x8] sm:$0xff] %v367
    %400 = vst [vmem:[#allocation5 + $0x10] sm:$0xff] %v368
    %401 = vst [vmem:[#allocation5 + $0x18] sm:$0xff] %v369
    %402 = vst [vmem:[#allocation5 + $0x20] sm:$0xff] %v370
    %403 = vst [vmem:[#allocation5 + $0x28] sm:$0xff] %v371
    %404 = vst [vmem:[#allocation5 + $0x30] sm:$0xff] %v372
    %405 = vst [vmem:[#allocation5 + $0x38] sm:$0xff] %v373
    %406 = vst [vmem:[#allocation5 + $0x40] sm:$0xff] %v374
    %407 = vst [vmem:[#allocation5 + $0x48] sm:$0xff] %v375
    %408 = vst [vmem:[#allocation5 + $0x50] sm:$0xff] %v376
    %409 = vst [vmem:[#allocation5 + $0x58] sm:$0xff] %v377
    %410 = vst [vmem:[#allocation5 + $0x60] sm:$0xff] %v378
    %411 = vst [vmem:[#allocation5 + $0x68] sm:$0xff] %v379
    %412 = vst [vmem:[#allocation5 + $0x70] sm:$0xff] %v380
    %413 = vst [vmem:[#allocation5 + $0x78] sm:$0xff] %v381
    %414 = vst [vmem:[#allocation5 + $0x80] sm:$0xff] %v382
    %415 = vst [vmem:[#allocation5 + $0x88] sm:$0xff] %v383
    %416 = vst [vmem:[#allocation5 + $0x90] sm:$0xff] %v384
    %417 = vst [vmem:[#allocation5 + $0x98] sm:$0xff] %v385
    %418 = vst [vmem:[#allocation5 + $0xa0] sm:$0xff] %v386
    %419 = vst [vmem:[#allocation5 + $0xa8] sm:$0xff] %v387
    %420 = vst [vmem:[#allocation5 + $0xb0] sm:$0xff] %v388
    %421 = vst [vmem:[#allocation5 + $0xb8] sm:$0xff] %v389
    %422 = vst [vmem:[#allocation5 + $0xc0] sm:$0xff] %v390
    %423 = vst [vmem:[#allocation5 + $0xc8] sm:$0xff] %v391
    %424 = vst [vmem:[#allocation5 + $0xd0] sm:$0xff] %v392
    %425 = vst [vmem:[#allocation5 + $0xd8] sm:$0xff] %v393
    %426 = vst [vmem:[#allocation5 + $0xe0] sm:$0xff] %v394
    %427 = vst [vmem:[#allocation5 + $0xe8] sm:$0xff] %v395
    %428 = vst [vmem:[#allocation5 + $0xf0] sm:$0xff] %v396
    %429 = vst [vmem:[#allocation5 + $0xf8] sm:$0xff] %v397
    // Predicated region
    $region18: #{tpu_custom_call.1} parent=1 // pred_check
      _
    $region19: #{tpu_custom_call.1} parent=1 // pred_check_branch
      %431 = sbr.rel (0) target = $region21
    $region20: #{tpu_custom_call.1} parent=1 // pred_region
      %s433 = ssub.s32 4096, 4096
      %434 = vsyncadd [#allocation4], %s433
      %s435 = sshll.u32 [#allocation5], 4
      %s436 = int_to_ptr.vmem [resolvable:$true] %s435
      %441 = dma.vmem_to_hbm [thread:$0]  %s436, 4096, %s3, [#allocation4], 512, 512, 32
    $region21: #{tpu_custom_call.1} parent=1 // pred_fallthru
      _
    // Predicated region
    $region22: #{tpu_custom_call.1} parent=1 // pred_check
      _
    $region23: #{tpu_custom_call.1} parent=1 // pred_check_branch
      %443 = sbr.rel (0) target = $region25
    $region24: #{tpu_custom_call.1} parent=1 // pred_region
      %444 = dma.done [#allocation4], 4096
    $region25: #{tpu_custom_call.1} parent=1 // pred_fallthru
      _
    %445 = vsyncpa [#allocation3], 1
    %446 = vsyncpa [#allocation4], 1

</llo_original>
